<compile_context>
chip_gen: v7x
topology: tpu7x:2x2x1
jax: 0.10.0
libtpu: 0.0.40
codegen_flags: <defaults>
</compile_context>

<pallas_src>
import jax
import jax.numpy as jnp
from jax.experimental import pallas as pl
from jax.experimental.pallas import tpu as pltpu


def _round_up(x, m):
    return ((x + m - 1) // m) * m


def _interp_kernel(bary_ref, attrs_ref, out_ref):
    # bary_ref : (3, TP)    f32   -- barycentric weights, pixels on lanes
    # attrs_ref: (3, D, TP) bf16  -- per-face-vertex attributes, pixels on lanes
    # out_ref  : (D, TP)    f32
    bary = bary_ref[...].astype(jnp.float32)     # (3, TP)
    a0 = attrs_ref[0].astype(jnp.float32)        # (D, TP)
    a1 = attrs_ref[1].astype(jnp.float32)
    a2 = attrs_ref[2].astype(jnp.float32)
    acc = bary[0:1, :] * a0                      # (1,TP) broadcast over D sublanes
    acc = acc + bary[1:2, :] * a1
    acc = acc + bary[2:3, :] * a2
    out_ref[...] = acc.astype(out_ref.dtype)


def interpolate_face_attributes(bary, attrs, *, tp=8192, out_dtype=jnp.float32):
    """Pallas hot path: per-pixel barycentric interpolation of face attributes.

    bary : (P, 3)    float  -- barycentric weights
    attrs: (P, 3, D) float  -- per-face-vertex attributes (bfloat16 recommended)
    returns (P, D) out_dtype
    """
    P, three = bary.shape
    assert three == 3
    Pa, threea, D = attrs.shape
    assert Pa == P and threea == 3

    # Lane-aligned pixel block (multiple of 128), capped at `tp`; keep >= 2
    # grid steps when P allows so both v7x TensorCores get work.
    tp_eff = min(tp, max(128, _round_up((P + 1) // 2, 128)))
    Pp = _round_up(P, tp_eff)
    grid = (Pp // tp_eff,)

    # Layout plumbing (done by XLA): pixels-last, lane-dense, padded to Pp.
    bary_t = jnp.transpose(bary.astype(jnp.float32), (1, 0))    # (3, P)
    attrs_t = jnp.transpose(attrs.astype(jnp.bfloat16), (1, 2, 0))  # (3, D, P)
    if Pp != P:
        bary_t = jnp.pad(bary_t, ((0, 0), (0, Pp - P)))
        attrs_t = jnp.pad(attrs_t, ((0, 0), (0, 0), (0, Pp - P)))

    out_t = pl.pallas_call(
        _interp_kernel,
        out_shape=jax.ShapeDtypeStruct((D, Pp), out_dtype),
        grid_spec=pl.GridSpec(
            grid=grid,
            in_specs=[
                pl.BlockSpec((3, tp_eff), lambda i: (0, i)),
                pl.BlockSpec((3, D, tp_eff), lambda i: (0, 0, i)),
            ],
            out_specs=pl.BlockSpec((D, tp_eff), lambda i: (0, i)),
        ),
        compiler_params=pltpu.CompilerParams(
            dimension_semantics=("parallel",)),
    )(bary_t, attrs_t)

    return jnp.transpose(out_t[:, :P], (1, 0))                  # (P, D)


class Pytorch3dRasterizer:
    """JAX counterpart of decalib.utils.renderer_fake.Pytorch3dRasterizer.

    The reference module's __init__ registers no parameters and its forward
    returns None unconditionally; that behaviour is reproduced exactly.
    """

    def __init__(self, image_size=224):
        self.image_size = image_size  # stored but unused, like the stub

    def forward(self, vertices, faces, attributes=None, h=None, w=None):
        # TODO(synk): the reference (fake) forward is a no-op returning None; the full
        # pytorch3d triangle-coverage / z-buffer rasterization is not reproduced here --
        # only the barycentric attribute-interpolation hot path is expressed as the
        # Pallas kernel `interpolate_face_attributes` exercised in __main__.
        return None

    __call__ = forward


if __name__ == "__main__":
    key = jax.random.PRNGKey(0)
    k_v, k_a, k_b, k_c = jax.random.split(key, 4)

    # --- stub module semantics, small shapes consistent with the module ---
    #   vertices: (batch=2, num_verts=32, 3), faces: (num_faces=8, 3) int32,
    #   attributes: (batch=2, num_faces=8, 3, D=8)
    B, V, F, D = 2, 32, 8, 8
    vertices = jax.random.normal(k_v, (B, V, 3), dtype=jnp.float32)
    faces = (jnp.arange(F * 3, dtype=jnp.int32).reshape(F, 3)) % V
    attributes = jax.random.normal(k_a, (B, F, 3, D), dtype=jnp.float32)

    rasterizer = Pytorch3dRasterizer(image_size=16)
    out = rasterizer(vertices, faces, attributes, h=16, w=16)
    assert out is None  # exact stub semantics

    # --- exercise the Pallas interpolation kernel ---
    # P deliberately not a multiple of 128 to exercise the padding path; the
    # block chooser gives tp_eff=256 -> a 2-step parallel grid.
    P = 300
    raw = jax.random.uniform(k_b, (P, 3), dtype=jnp.float32) + 1e-3
    bary = raw / jnp.sum(raw, axis=-1, keepdims=True)                 # (P, 3) f32
    face_attrs = jax.random.normal(k_c, (P, 3, D),
                                   dtype=jnp.float32).astype(jnp.bfloat16)  # (P, 3, D) bf16

    pix_vals = interpolate_face_attributes(bary, face_attrs)
    pix_vals = jax.block_until_ready(pix_vals)

    # correctness check against pure-JAX reference (same bf16 inputs, f32 accum)
    ref = jnp.sum(bary[:, :, None] * face_attrs.astype(jnp.float32), axis=1)
    assert pix_vals.shape == (P, D)
    assert jnp.allclose(pix_vals, ref, atol=1e-4, rtol=1e-4)

    print("KERNEL_OK")
</pallas_src>

<mosaic_0001>
module attributes {stable_mosaic.version = 11 : i64} {
  func.func @_interp_kernel(%arg0: i32, %arg1: memref<3x256xf32, #tpu.memory_space<vmem>>, %arg2: memref<3x8x256xbf16, #tpu.memory_space<vmem>>, %arg3: memref<8x256xf32, #tpu.memory_space<vmem>>) attributes {dimension_semantics = [#tpu.dimension_semantics<parallel>], iteration_bounds = array<i64: 2>, scalar_prefetch = 0 : i64, scratch_operands = 0 : i64, tpu.core_type = #tpu.core_type<tc>, window_params = [{transform_indices = @transform_0, window_bounds = array<i64: 3, 256>}, {transform_indices = @transform_1, window_bounds = array<i64: 3, 8, 256>}, {transform_indices = @transform_2, window_bounds = array<i64: 8, 256>}]} {
    %c0 = arith.constant 0 : index
    %c0_0 = arith.constant 0 : index
    %0 = vector.load %arg1[%c0, %c0_0] : memref<3x256xf32, #tpu.memory_space<vmem>>, vector<3x256xf32>
    %c0_1 = arith.constant 0 : index
    %c0_2 = arith.constant 0 : index
    %c0_3 = arith.constant 0 : index
    %1 = vector.load %arg2[%c0_1, %c0_2, %c0_3] : memref<3x8x256xbf16, #tpu.memory_space<vmem>>, vector<1x8x256xbf16>
    %2 = vector.shape_cast %1 : vector<1x8x256xbf16> to vector<8x256xbf16>
    %3 = arith.extf %2 : vector<8x256xbf16> to vector<8x256xf32>
    %c1 = arith.constant 1 : index
    %c0_4 = arith.constant 0 : index
    %c0_5 = arith.constant 0 : index
    %4 = vector.load %arg2[%c1, %c0_4, %c0_5] : memref<3x8x256xbf16, #tpu.memory_space<vmem>>, vector<1x8x256xbf16>
    %5 = vector.shape_cast %4 : vector<1x8x256xbf16> to vector<8x256xbf16>
    %6 = arith.extf %5 : vector<8x256xbf16> to vector<8x256xf32>
    %c2 = arith.constant 2 : index
    %c0_6 = arith.constant 0 : index
    %c0_7 = arith.constant 0 : index
    %7 = vector.load %arg2[%c2, %c0_6, %c0_7] : memref<3x8x256xbf16, #tpu.memory_space<vmem>>, vector<1x8x256xbf16>
    %8 = vector.shape_cast %7 : vector<1x8x256xbf16> to vector<8x256xbf16>
    %9 = arith.extf %8 : vector<8x256xbf16> to vector<8x256xf32>
    %10 = vector.extract_strided_slice %0 {offsets = [0, 0], sizes = [1, 256], strides = [1, 1]} : vector<3x256xf32> to vector<1x256xf32>
    %11 = vector.broadcast %10 : vector<1x256xf32> to vector<8x256xf32>
    %12 = arith.mulf %11, %3 : vector<8x256xf32>
    %13 = vector.extract_strided_slice %0 {offsets = [1, 0], sizes = [1, 256], strides = [1, 1]} : vector<3x256xf32> to vector<1x256xf32>
    %14 = vector.broadcast %13 : vector<1x256xf32> to vector<8x256xf32>
    %15 = arith.mulf %14, %6 : vector<8x256xf32>
    %16 = arith.addf %12, %15 : vector<8x256xf32>
    %17 = vector.extract_strided_slice %0 {offsets = [2, 0], sizes = [1, 256], strides = [1, 1]} : vector<3x256xf32> to vector<1x256xf32>
    %18 = vector.broadcast %17 : vector<1x256xf32> to vector<8x256xf32>
    %19 = arith.mulf %18, %9 : vector<8x256xf32>
    %20 = arith.addf %16, %19 : vector<8x256xf32>
    %c0_8 = arith.constant 0 : index
    %c0_9 = arith.constant 0 : index
    %21 = vector.load %arg3[%c0_8, %c0_9] : memref<8x256xf32, #tpu.memory_space<vmem>>, vector<8x256xf32>
    tpu.vector_store %arg3[%c0_8, %c0_9], %20 {strides = array<i32>} : memref<8x256xf32, #tpu.memory_space<vmem>>, vector<8x256xf32>,
    return
  }
  func.func @transform_0(%arg0: i32) -> (i32, i32) {
    %c0_i32 = arith.constant 0 : i32
    %c0_i32_0 = arith.constant 0 : i32
    return %c0_i32, %arg0 : i32, i32
  }
  func.func @transform_1(%arg0: i32) -> (i32, i32, i32) {
    %c0_i32 = arith.constant 0 : i32
    %c0_i32_0 = arith.constant 0 : i32
    %c0_i32_1 = arith.constant 0 : i32
    return %c0_i32, %c0_i32_0, %arg0 : i32, i32, i32
  }
  func.func @transform_2(%arg0: i32) -> (i32, i32) {
    %c0_i32 = arith.constant 0 : i32
    %c0_i32_0 = arith.constant 0 : i32
    return %c0_i32, %arg0 : i32, i32
  }
}

</mosaic_0001>

<llo_original>
// kernel: tpu_custom_call.1
$region0: #{tpu_custom_call.1}
  #allocation0 [shape = 'u32[]', space=smem, size = 0x4, offset = 0x4, fixed_abs, tag = 'smem constant byte address 0x4 - core index']
  #allocation1 [shape = 'u32[144,128]{1,0:T(1,128)}', space=vmem, size = 0x12000, scoped, tag = 'internal scratch']
  %s0 = inlined_call_operand.hbm [shape: f32[3,512], index: 0, kind: input, shape index: {}]
  %s1 = inlined_call_operand.hbm [shape: bf16[3,8,512], index: 1, kind: input, shape index: {}]
  %s2 = inlined_call_operand.hbm [shape: f32[8,512], index: 2, kind: output, shape index: {}]
  %s3 = sld [smem:[#allocation0]]
  $region49: #{tpu_custom_call.1} parent=0
    _
  %s5 = ssub.s32 1, %s3
  %s6 = scalar_select 0, %s5, %s3
  $region1: #{tpu_custom_call.1} parent=0
    #allocation2 [shape = 'u8[8192]{0}', space=vmem, size = 0x2000, scoped, tag = 'input window, operand 0']
    #allocation3 [shape = 's32[2]{0}', space=sflag, size = 0x8, scoped, tag = 'scoped memory for tpu_custom_call.1']
    #allocation4 [shape = 's32[2]{0}', space=sflag, size = 0x8, scoped, tag = 'scoped memory for tpu_custom_call.1']
    #allocation5 [shape = 'u8[24576]{0}', space=vmem, size = 0x6000, scoped, tag = 'input window, operand 1']
    #allocation6 [shape = 's32[2]{0}', space=sflag, size = 0x8, scoped, tag = 'scoped memory for tpu_custom_call.1']
    #allocation7 [shape = 'u8[16384]{0}', space=vmem, size = 0x4000, scoped, tag = 'output window, operand 0']
    %7 = vsyncpa [#allocation3], 0
    %s8 = scalar_lea.sflag [#allocation3], 1
    %9 = vsyncpa %s8, 0
    %10 = vsyncpa [#allocation6], 0
    %s11 = scalar_lea.sflag [#allocation6], 1
    %12 = vsyncpa %s11, 0
    %13 = vsyncpa [#allocation4], 0
    %s14 = scalar_lea.sflag [#allocation4], 1
    %15 = vsyncpa %s14, 0
    loop: start=0, step=1, limit=4
    $region2: #{tpu_custom_call.1} parent=1 // loop_pre_header
      _
    $region3: #{tpu_custom_call.1} parent=1 // loop_header
      %s17 = sphi 0, %s21
      %p18 = scmp.ge.s32.totalorder %s17, 4
      %s27 = sphi 0, %s29
      %s30 = sphi 0, %s27
      %s31 = sphi 0, %s30
      %s47 = sphi 0, %s31
      %s53 = sphi 0, %s55
      %s56 = sphi 0, %s53
      %s57 = sphi 0, %s56
      %s73 = sphi 0, %s57
      %s79 = sphi 0, %s81
      %s82 = sphi 0, %s79
      %s83 = sphi 0, %s82
      %s99 = sphi 0, %s83
    $region4: #{tpu_custom_call.1} parent=1 // loop_header_branch
      %20 = sbr.rel (%p18) target = $region8
    $region5: #{tpu_custom_call.1} parent=1 // loop_body
      %s22 = ssub.s32 %s17, 1
      %s23 = ssub.s32 %s17, 2
      %s24 = sadd.s32 %s17, 1
      %s25 = ssub.s32 %s17, %s24
      %p26 = scmp.eq.s32.totalorder %s25, 0
      %s28 = sadd.s32 %s27, 1
      %s29 = scalar_select %p26, %s27, %s28
      %p32 = pneg %p26
      %p33 = scmp.eq.s32.totalorder %s17, 1
      %p34 = por %p32, %p33
      %p35 = scmp.ne.s32.totalorder %s27, %s30
      %p36 = scmp.eq.s32.totalorder %s17, 0
      %p37 = por %p35, %p36
      %p38 = scmp.ne.s32.totalorder %s27, %s30
      %p39 = scmp.eq.s32.totalorder %s22, 1
      %p40 = por %p38, %p39
      %p41 = scmp.ne.s32.totalorder %s30, %s31
      %p42 = scmp.eq.s32.totalorder %s22, 0
      %p43 = por %p41, %p42
      %p44 = scmp.ne.s32.totalorder %s30, %s31
      %p45 = scmp.eq.s32.totalorder %s23, 1
      %p46 = por %p44, %p45
      %p48 = scmp.ne.s32.totalorder %s31, %s47
      %p49 = scmp.eq.s32.totalorder %s23, 0
      %p50 = por %p48, %p49
      %s51 = ssub.s32 %s17, %s24
      %p52 = scmp.eq.s32.totalorder %s51, 0
      %s54 = sadd.s32 %s53, 1
      %s55 = scalar_select %p52, %s53, %s54
      %p58 = pneg %p52
      %p59 = scmp.eq.s32.totalorder %s17, 1
      %p60 = por %p58, %p59
      %p61 = scmp.ne.s32.totalorder %s53, %s56
      %p62 = scmp.eq.s32.totalorder %s17, 0
      %p63 = por %p61, %p62
      %p64 = scmp.ne.s32.totalorder %s53, %s56
      %p65 = scmp.eq.s32.totalorder %s22, 1
      %p66 = por %p64, %p65
      %p67 = scmp.ne.s32.totalorder %s56, %s57
      %p68 = scmp.eq.s32.totalorder %s22, 0
      %p69 = por %p67, %p68
      %p70 = scmp.ne.s32.totalorder %s56, %s57
      %p71 = scmp.eq.s32.totalorder %s23, 1
      %p72 = por %p70, %p71
      %p74 = scmp.ne.s32.totalorder %s57, %s73
      %p75 = scmp.eq.s32.totalorder %s23, 0
      %p76 = por %p74, %p75
      %s77 = ssub.s32 %s17, %s24
      %p78 = scmp.eq.s32.totalorder %s77, 0
      %s80 = sadd.s32 %s79, 1
      %s81 = scalar_select %p78, %s79, %s80
      %p84 = pneg %p78
      %p85 = scmp.eq.s32.totalorder %s17, 1
      %p86 = por %p84, %p85
      %p87 = scmp.ne.s32.totalorder %s79, %s82
      %p88 = scmp.eq.s32.totalorder %s17, 0
      %p89 = por %p87, %p88
      %p90 = scmp.ne.s32.totalorder %s79, %s82
      %p91 = scmp.eq.s32.totalorder %s22, 1
      %p92 = por %p90, %p91
      %p93 = scmp.ne.s32.totalorder %s82, %s83
      %p94 = scmp.eq.s32.totalorder %s22, 0
      %p95 = por %p93, %p94
      %p96 = scmp.ne.s32.totalorder %s82, %s83
      %p97 = scmp.eq.s32.totalorder %s23, 1
      %p98 = por %p96, %p97
      %p100 = scmp.ne.s32.totalorder %s83, %s99
      %p101 = scmp.eq.s32.totalorder %s23, 0
      %p102 = por %p100, %p101
      %p103 = scmp.le.s32.totalorder 1, %s17
      %p104 = scmp.lt.s32.totalorder %s17, 3
      %p105 = pnand %p103, %p104
      %p106 = pneg %p105
      // Predicated region
      $region9: #{tpu_custom_call.1} parent=5 // pred_check
        _
      $region10: #{tpu_custom_call.1} parent=5 // pred_check_branch
        %108 = sbr.rel (%p105) target = $region12
      $region11: #{tpu_custom_call.1} parent=5 // pred_region
        %s109 = ssub.s32 %s17, 1
      $region12: #{tpu_custom_call.1} parent=5 // pred_fallthru
        _
      %p110 = scmp.lt.s32.totalorder %s17, 2
      // Predicated region
      $region13: #{tpu_custom_call.1} parent=5 // pred_check
        %p111 = pneg %p110
      $region14: #{tpu_custom_call.1} parent=5 // pred_check_branch
        %113 = sbr.rel (%p111) target = $region16
      $region15: #{tpu_custom_call.1} parent=5 // pred_region
        // Predicated region
        $region17: #{tpu_custom_call.1} parent=15 // pred_check
          %p114 = pneg %p37
        $region18: #{tpu_custom_call.1} parent=15 // pred_check_branch
          %116 = sbr.rel (%p114) target = $region20
        $region19: #{tpu_custom_call.1} parent=15 // pred_region
          %s117 = sand.u32 %s27, 1
          %s118 = scalar_lea.sflag [#allocation3], %s117
          %s119 = sand.u32 %s27, 1
          %s120 = smul.addr %s119, 8
          %s121 = scalar_lea.vmem [#allocation2], %s120
          %s122 = smul.u32 2, %s17
          %s124 = ssub.s32 128, 128
          %125 = vsyncadd %s118, %s124
          %s126 = smul.addr %s122, 64
          %s127 = scalar_lea.hbm %s0, %s126
          %s129 = sshll.u32 %s121, 4
          %s130 = int_to_ptr.vmem [resolvable:$true] %s129
          %132 = dma.hbm_to_vmem [thread:$0]  %s127, 128, %s130, %s118
        $region20: #{tpu_custom_call.1} parent=15 // pred_fallthru
          _
        // Predicated region
        $region21: #{tpu_custom_call.1} parent=15 // pred_check
          %p133 = pneg %p63
        $region22: #{tpu_custom_call.1} parent=15 // pred_check_branch
          %135 = sbr.rel (%p133) target = $region24
        $region23: #{tpu_custom_call.1} parent=15 // pred_region
          %s136 = sand.u32 %s53, 1
          %s137 = scalar_lea.sflag [#allocation6], %s136
          %s138 = sand.u32 %s53, 1
          %s139 = smul.addr %s138, 24
          %s140 = scalar_lea.vmem [#allocation5], %s139
          %s141 = smul.u32 2, %s17
          %s143 = ssub.s32 384, 384
          %144 = vsyncadd %s137, %s143
          %s145 = smul.addr %s141, 64
          %s146 = scalar_lea.hbm %s1, %s145
          %s147 = sshll.u32 %s140, 4
          %s148 = int_to_ptr.vmem [resolvable:$true] %s147
          %153 = dma.hbm_to_vmem [thread:$0]  %s146, 384, %s148, %s137, 256, 128, 8
        $region24: #{tpu_custom_call.1} parent=15 // pred_fallthru
          _
      $region16: #{tpu_custom_call.1} parent=5 // pred_fallthru
        _
      %p154 = scmp.le.s32.totalorder 1, %s17
      %p155 = scmp.lt.s32.totalorder %s17, 3
      %p156 = pnand %p154, %p155
      %p157 = pneg %p156
      // Predicated region
      $region25: #{tpu_custom_call.1} parent=5 // pred_check
        _
      $region26: #{tpu_custom_call.1} parent=5 // pred_check_branch
        %159 = sbr.rel (%p156) target = $region28
      $region27: #{tpu_custom_call.1} parent=5 // pred_region
        %s160 = ssub.s32 %s17, 1
        %s161 = sand.u32 %s30, 1
        %s162 = scalar_lea.sflag [#allocation3], %s161
        %s163 = sand.u32 %s30, 1
        %s164 = smul.addr %s163, 8
        %s165 = scalar_lea.vmem [#allocation2], %s164
        // Predicated region
        $region29: #{tpu_custom_call.1} parent=27 // pred_check
          %p166 = pneg %p43
        $region30: #{tpu_custom_call.1} parent=27 // pred_check_branch
          %168 = sbr.rel (%p166) target = $region32
        $region31: #{tpu_custom_call.1} parent=27 // pred_region
          %169 = dma.done %s162, 128
        $region32: #{tpu_custom_call.1} parent=27 // pred_fallthru
          _
        %s170 = sand.u32 %s56, 1
        %s171 = scalar_lea.sflag [#allocation6], %s170
        %s172 = sand.u32 %s56, 1
        %s173 = smul.addr %s172, 24
        %s174 = scalar_lea.vmem [#allocation5], %s173
        // Predicated region
        $region33: #{tpu_custom_call.1} parent=27 // pred_check
          %p175 = pneg %p69
        $region34: #{tpu_custom_call.1} parent=27 // pred_check_branch
          %177 = sbr.rel (%p175) target = $region36
        $region35: #{tpu_custom_call.1} parent=27 // pred_region
          %178 = dma.done %s171, 384
        $region36: #{tpu_custom_call.1} parent=27 // pred_fallthru
          _
        %s179 = sand.u32 %s30, 1
        %s180 = scalar_lea.sflag [#allocation3], %s179
        %s181 = sand.u32 %s30, 1
        %s182 = smul.addr %s181, 8
        %s183 = scalar_lea.vmem [#allocation2], %s182
        %p184 = pneg %p43
        %p185 = pneg %p40
        %s186 = sand.u32 %s56, 1
        %s187 = scalar_lea.sflag [#allocation6], %s186
        %s188 = sand.u32 %s56, 1
        %s189 = smul.addr %s188, 24
        %s190 = scalar_lea.vmem [#allocation5], %s189
        %p191 = pneg %p69
        %p192 = pneg %p66
        %p193 = pneg %p95
        %p194 = pneg %p92
        %s195 = sand.u32 %s82, 1
        %s196 = scalar_lea.sflag [#allocation4], %s195
        %s197 = sand.u32 %s82, 1
        %s198 = smul.addr %s197, 16
        %s199 = scalar_lea.vmem [#allocation7], %s198
        %s200 = smul.u32 2, %s22
        %s201 = smul.u32 2, %s22
        %s202 = smul.u32 2, %s22
        %v203 = vld [vmem:[%s165] sm:$0x77]
        %v204 = vld [vmem:[%s174] sm:$0xff]
        %v205 = vunpack.c.l.bf16 %v204
        %v206 = vunpack.c.h.bf16 %v204
        %s207 = scalar_lea.vmem %s174, 8 [#allocation5]
        %v208 = vld [vmem:[%s207] sm:$0xff]
        %v209 = vunpack.c.l.bf16 %v208
        %v210 = vunpack.c.h.bf16 %v208
        %s211 = scalar_lea.vmem %s174, 16 [#allocation5]
        %v212 = vld [vmem:[%s211] sm:$0xff]
        %v213 = vunpack.c.l.bf16 %v212
        %v214 = vunpack.c.h.bf16 %v212
        %v216 = vlaneseq
        %v217 = vshrl.u32 %v216, 7
        %v218 = vsub.s32 0, %v217
        %v219 = vrot.slane %v203, %v218
        %v220 = vlaneseq
        %v221 = vshrl.u32 %v220, 7
        %v222 = vsub.s32 4, %v221
        %v223 = vrot.slane %v203, %v222
        %v226 = vlaneseq
        %v227 = vshrl.u32 %v226, 7
        %v228 = vsub.s32 0, %v227
        %v229 = vrot.slane %v219, %v228
        %v230 = vlaneseq
        %v231 = vshrl.u32 %v230, 7
        %v232 = vsub.s32 0, %v231
        %v233 = vrot.slane %v223, %v232
        %v234 = vmul.f32 %v229, %v205
        %v235 = vmul.f32 %v233, %v206
        %v236 = vlaneseq
        %v237 = vshrl.u32 %v236, 7
        %v238 = vsub.s32 1, %v237
        %v239 = vrot.slane %v203, %v238
        %v240 = vlaneseq
        %v241 = vshrl.u32 %v240, 7
        %v242 = vsub.s32 5, %v241
        %v243 = vrot.slane %v203, %v242
        %v246 = vlaneseq
        %v247 = vshrl.u32 %v246, 7
        %v248 = vsub.s32 1, %v247
        %v249 = vrot.slane %v239, %v248
        %v250 = vlaneseq
        %v251 = vshrl.u32 %v250, 7
        %v252 = vsub.s32 1, %v251
        %v253 = vrot.slane %v243, %v252
        %v254 = vmul.f32 %v249, %v209
        %v255 = vmul.f32 %v253, %v210
        %v256 = vadd.f32 %v234, %v254
        %v257 = vadd.f32 %v235, %v255
        %v258 = vlaneseq
        %v259 = vshrl.u32 %v258, 7
        %v260 = vsub.s32 2, %v259
        %v261 = vrot.slane %v203, %v260
        %v262 = vlaneseq
        %v263 = vshrl.u32 %v262, 7
        %v264 = vsub.s32 6, %v263
        %v265 = vrot.slane %v203, %v264
        %v268 = vlaneseq
        %v269 = vshrl.u32 %v268, 7
        %v270 = vsub.s32 2, %v269
        %v271 = vrot.slane %v261, %v270
        %v272 = vlaneseq
        %v273 = vshrl.u32 %v272, 7
        %v274 = vsub.s32 2, %v273
        %v275 = vrot.slane %v265, %v274
        %v276 = vmul.f32 %v271, %v213
        %v277 = vmul.f32 %v275, %v214
        %v278 = vadd.f32 %v256, %v276
        %v279 = vadd.f32 %v257, %v277
        %280 = vst [vmem:[%s199] sm:$0xff] %v278
        %281 = vst [vmem:[%s199 + $0x8] sm:$0xff] %v279
        %s282 = sand.u32 %s82, 1
        %s283 = scalar_lea.sflag [#allocation4], %s282
        %s284 = sand.u32 %s82, 1
        %s285 = smul.addr %s284, 16
        %s286 = scalar_lea.vmem [#allocation7], %s285
        // Predicated region
        $region37: #{tpu_custom_call.1} parent=27 // pred_check
          %p287 = pneg %p92
        $region38: #{tpu_custom_call.1} parent=27 // pred_check_branch
          %289 = sbr.rel (%p287) target = $region40
        $region39: #{tpu_custom_call.1} parent=27 // pred_region
          %s290 = smul.u32 2, %s22
          %s292 = ssub.s32 256, 256
          %293 = vsyncadd %s283, %s292
          %s294 = smul.addr %s290, 128
          %s295 = scalar_lea.hbm %s2, %s294
          %s297 = sshll.u32 %s286, 4
          %s298 = int_to_ptr.vmem [resolvable:$true] %s297
          %300 = dma.vmem_to_hbm [thread:$0]  %s298, 256, %s295, %s283
        $region40: #{tpu_custom_call.1} parent=27 // pred_fallthru
          _
      $region28: #{tpu_custom_call.1} parent=5 // pred_fallthru
        _
      %p301 = scmp.le.s32.totalorder 2, %s17
      // Predicated region
      $region41: #{tpu_custom_call.1} parent=5 // pred_check
        %p302 = pneg %p301
      $region42: #{tpu_custom_call.1} parent=5 // pred_check_branch
        %304 = sbr.rel (%p302) target = $region44
      $region43: #{tpu_custom_call.1} parent=5 // pred_region
        %s305 = ssub.s32 %s17, 2
        // Predicated region
        $region45: #{tpu_custom_call.1} parent=43 // pred_check
          %p306 = pneg %p98
        $region46: #{tpu_custom_call.1} parent=43 // pred_check_branch
          %308 = sbr.rel (%p306) target = $region48
        $region47: #{tpu_custom_call.1} parent=43 // pred_region
          %s309 = sand.u32 %s83, 1
          %s310 = scalar_lea.sflag [#allocation4], %s309
          %s311 = sand.u32 %s83, 1
          %s312 = smul.addr %s311, 16
          %s313 = scalar_lea.vmem [#allocation7], %s312
          %314 = dma.done %s310, 256
        $region48: #{tpu_custom_call.1} parent=43 // pred_fallthru
          _
      $region44: #{tpu_custom_call.1} parent=5 // pred_fallthru
        _
    $region6: #{tpu_custom_call.1} parent=1 // loop_footer
      %s21 = sadd.s32 1, %s17
    $region7: #{tpu_custom_call.1} parent=1 // loop_footer_branch
      %16 = sbr.rel target = $region3
    $region8: #{tpu_custom_call.1} parent=1 // loop_exit
      _
    %315 = vsyncpa [#allocation3], 1
    %s316 = scalar_lea.sflag [#allocation3], 1
    %317 = vsyncpa %s316, 1
    %318 = vsyncpa [#allocation6], 1
    %s319 = scalar_lea.sflag [#allocation6], 1
    %320 = vsyncpa %s319, 1
    %321 = vsyncpa [#allocation4], 1
    %s322 = scalar_lea.sflag [#allocation4], 1
    %323 = vsyncpa %s322, 1

</llo_original>
